<compile_context>
chip_gen: v7x
topology: tpu7x:2x2x1
jax: 0.10.0
libtpu: 0.0.40
codegen_flags: <defaults>
</compile_context>

<pallas_src>
import jax
import jax.numpy as jnp
from jax.experimental import pallas as pl
from jax.experimental.pallas import tpu as pltpu

_LANE = 128
_SUBLANE = 8
_DEFAULT_MAX_TB = 256   # use 128 on v5e (4x128 MXU, 16 MiB scoped VMEM default)


def _round_up(n, m):
    return ((n + m - 1) // m) * m


# ---------------------------------------------------------------------------
# Pallas kernel: T fused ponder steps of (RNNCell + hidden2ans)
#   grid = (batch_tiles, T); T trailing, "arbitrary"; hidden carried in VMEM.
# ---------------------------------------------------------------------------
def _srn_steps_kernel(x_ref, h0_ref, wih_ref, whh_ref, b_ref, wout_ref,
                      bout_ref, y_ref, hfin_ref, pre_sc, h_sc):
    t = pl.program_id(1)

    # t == 0: hoisted input projection (x is constant across ponder steps) and
    # hidden-carry initialization, once per batch tile.
    @pl.when(t == 0)
    def _():
        pre_sc[...] = (jnp.dot(x_ref[...].astype(wih_ref.dtype), wih_ref[...],
                               preferred_element_type=jnp.float32)
                       + b_ref[...])
        h_sc[...] = h0_ref[...].astype(jnp.float32)

    # controller step: h_new = tanh(pre_x + h_prev @ W_hh)   (f32 accumulation)
    h_new = jnp.tanh(pre_sc[...]
                     + jnp.dot(h_sc[...].astype(whh_ref.dtype), whh_ref[...],
                               preferred_element_type=jnp.float32))
    h_sc[...] = h_new

    # hidden2ans: y_t = h_new @ W_out + b_out  (lane-dense Op-wide store)
    y_ref[...] = (jnp.dot(h_new.astype(wout_ref.dtype), wout_ref[...],
                          preferred_element_type=jnp.float32)
                  + bout_ref[...]).astype(y_ref.dtype)

    # last step: write the final hidden state back to HBM (single writeback).
    @pl.when(t == pl.num_programs(1) - 1)
    def _():
        hfin_ref[...] = h_new.astype(hfin_ref.dtype)


def _choose_batch_tile(B, max_tb):
    # >= 2 grid points whenever B >= 16 (feeds both v7x TensorCores and gives
    # the pipeline something to overlap); tiles are multiples of 8 sublanes.
    if B >= 16:
        return min(max_tb, _round_up(pl.cdiv(B, 2), _SUBLANE))
    return _round_up(max(B, 1), _SUBLANE)


def _vmem_limit_bytes(D, Hp, Op, tb, w_itemsize, a_itemsize):
    weights = w_itemsize * (D * Hp + Hp * Hp + Hp * Op) + 4 * (Hp + Op)
    acts_in = a_itemsize * tb * (D + Hp)          # x, h0 tiles
    outs = a_itemsize * tb * (Op + Hp)            # y, h_final tiles
    scratch = 4 * tb * Hp * 2                     # pre_x + hidden carries (f32)
    total = 2 * (weights + acts_in + outs) + scratch   # default double-buffering
    return int(min(max(total * 3 // 2 + (2 << 20), 16 << 20), 64 << 20))


def _srn_steps(x, h0_pad, prep, num_steps, *, max_tb=_DEFAULT_MAX_TB):
    """Run `num_steps` fused SRNCell steps in a single pallas_call.

    x: (B, D)  h0_pad: (B, Hp)  ->  y_all: (T, B, Op), h_final: (B, Hp)
    """
    assert num_steps >= 1
    B, D = x.shape
    Hp, Op = prep["Hp"], prep["Op"]

    tb = _choose_batch_tile(B, max_tb)
    Bp = _round_up(B, tb)
    if Bp != B:
        # pad the batch once outside the kernel (never a whole-batch fallback)
        x = jnp.pad(x, ((0, Bp - B), (0, 0)))
        h0_pad = jnp.pad(h0_pad, ((0, Bp - B), (0, 0)))
    n_bt = Bp // tb

    vlim = _vmem_limit_bytes(D, Hp, Op, tb,
                             jnp.dtype(prep["w_ih"].dtype).itemsize,
                             jnp.dtype(x.dtype).itemsize)

    y_all, h_fin = pl.pallas_call(
        _srn_steps_kernel,
        out_shape=(
            jax.ShapeDtypeStruct((num_steps, Bp, Op), x.dtype),
            jax.ShapeDtypeStruct((Bp, Hp), h0_pad.dtype),
        ),
        grid=(n_bt, num_steps),
        in_specs=[
            pl.BlockSpec((tb, D), lambda i, t: (i, 0)),    # x        (per tile, const over t)
            pl.BlockSpec((tb, Hp), lambda i, t: (i, 0)),   # h0       (per tile, const over t)
            pl.BlockSpec((D, Hp), lambda i, t: (0, 0)),    # W_ih     (VMEM-resident)
            pl.BlockSpec((Hp, Hp), lambda i, t: (0, 0)),   # W_hh     (VMEM-resident)
            pl.BlockSpec((1, Hp), lambda i, t: (0, 0)),    # fused b  (VMEM-resident)
            pl.BlockSpec((Hp, Op), lambda i, t: (0, 0)),   # W_out    (VMEM-resident)
            pl.BlockSpec((1, Op), lambda i, t: (0, 0)),    # b_out    (VMEM-resident)
        ],
        out_specs=(
            pl.BlockSpec((None, tb, Op), lambda i, t: (t, i, 0)),  # y_t  (lane-dense)
            pl.BlockSpec((tb, Hp), lambda i, t: (i, 0)),           # h_final (written at last t)
        ),
        scratch_shapes=[
            pltpu.VMEM((tb, Hp), jnp.float32),   # pre_x carry
            pltpu.VMEM((tb, Hp), jnp.float32),   # hidden carry
        ],
        compiler_params=pltpu.CompilerParams(
            dimension_semantics=("parallel", "arbitrary"),
            vmem_limit_bytes=vlim,
        ),
    )(x, h0_pad, prep["w_ih"], prep["w_hh"], prep["b"],
      prep["w_out"], prep["b_out"])

    if Bp != B:
        y_all = y_all[:, :B, :]
        h_fin = h_fin[:B, :]
    return y_all, h_fin


# ---------------------------------------------------------------------------
# One-time parameter preparation: flag/bias fold + lane-dense zero padding
# ---------------------------------------------------------------------------
def prepare_params(params, *, max_iter, weight_dtype=None):
    w_ih_full = params["w_ih"]            # (D + 1, H): last row multiplies b_flag
    D, H = w_ih_full.shape[0] - 1, w_ih_full.shape[1]
    O = params["w_out"].shape[1]
    Hp, Op = _round_up(H, _LANE), _round_up(O, _LANE)

    # b_flag is a trace-time constant (1 iff MAX_ITER == 1): fold flag * W_ih[-1]
    # and both RNNCell biases into a single bias row.
    flag = 1.0 if max_iter == 1 else 0.0
    b_fused = params["b_ih"] + params["b_hh"] + flag * w_ih_full[-1:, :]

    def pad2(a, rows, cols):
        return jnp.pad(a, ((0, rows - a.shape[0]), (0, cols - a.shape[1])))

    w_ih = pad2(w_ih_full[:-1, :], D, Hp)
    w_hh = pad2(params["w_hh"], Hp, Hp)
    b = pad2(b_fused, 1, Hp)
    w_out = pad2(params["w_out"], Hp, Op)
    b_out = pad2(params["b_out"], 1, Op)

    # Recommended on v5e, v6e AND v7x: weight_dtype=jnp.bfloat16 (bf16 is the
    # full-rate MXU format on every generation; the kernel casts LHS to match
    # so all three dots take the bf16 path).  Biases stay f32 (f32 accumulate).
    if weight_dtype is not None:
        w_ih, w_hh, w_out = (a.astype(weight_dtype) for a in (w_ih, w_hh, w_out))

    return dict(w_ih=w_ih, w_hh=w_hh, b=b, w_out=w_out, b_out=b_out,
                H=H, O=O, Hp=Hp, Op=Op)


# ---------------------------------------------------------------------------
# SRNCell forward — module semantics (one step); glue in plain JAX
# ---------------------------------------------------------------------------
def srn_cell_forward(x, previous_state, prep, *, max_tb=_DEFAULT_MAX_TB):
    # previous_state mirrors PyTorch: (_, previous_hidden, ponder_cost, steps)
    _, previous_hidden, previous_ponder_cost, previous_steps = previous_state
    steps = previous_steps + 1

    H, Hp, O = prep["H"], prep["Hp"], prep["O"]
    h_pad = previous_hidden
    if previous_hidden.shape[1] != Hp:
        h_pad = jnp.pad(previous_hidden, ((0, 0), (0, Hp - previous_hidden.shape[1])))

    y_all, h_fin = _srn_steps(x, h_pad, prep, num_steps=1, max_tb=max_tb)
    y = y_all[0][:, :O]
    s = h_fin[:, :H]   # non-LSTM controller: s_n is just the hidden state
    return (y, s, previous_ponder_cost, steps)


# ---------------------------------------------------------------------------
# Multi-step driver: T ponder steps fused in ONE pallas_call (the structural
# win: weights fetched once, hidden carried in VMEM, x projected once).
# ---------------------------------------------------------------------------
def srn_ponder_forward(x, previous_state, prep, num_steps,
                       *, max_tb=_DEFAULT_MAX_TB):
    _, previous_hidden, previous_ponder_cost, previous_steps = previous_state
    H, Hp, O = prep["H"], prep["Hp"], prep["O"]

    h_pad = previous_hidden
    if previous_hidden.shape[1] != Hp:
        h_pad = jnp.pad(previous_hidden, ((0, 0), (0, Hp - previous_hidden.shape[1])))

    y_all, h_fin = _srn_steps(x, h_pad, prep, num_steps=num_steps, max_tb=max_tb)
    ys = y_all[..., :O]                      # (T, B, O) — sliced once, outside
    s_T = h_fin[:, :H]
    steps = previous_steps + num_steps
    return ys, (ys[-1], s_T, previous_ponder_cost, steps)


# ---------------------------------------------------------------------------
# Deterministic parameter construction (PyTorch-style layout, pre-fold)
# ---------------------------------------------------------------------------
def make_params(key, input_dim, hidden_size, output_dim, dtype=jnp.float32):
    ks = jax.random.split(key, 6)
    bound = 1.0 / jnp.sqrt(hidden_size)
    u = lambda k, shape, b: jax.random.uniform(k, shape, dtype, -b, b)
    return {
        # controller (RNNCell): input is x concatenated with the 1-col flag
        "w_ih": u(ks[0], (input_dim + 1, hidden_size), bound),
        "w_hh": u(ks[1], (hidden_size, hidden_size), bound),
        "b_ih": u(ks[2], (1, hidden_size), bound),
        "b_hh": u(ks[3], (1, hidden_size), bound),
        # hidden2ans: Linear(hidden_size, output_dim)
        "w_out": u(ks[4], (hidden_size, output_dim), 1.0 / jnp.sqrt(hidden_size)),
        "b_out": u(ks[5], (1, output_dim), 1.0 / jnp.sqrt(hidden_size)),
    }


if __name__ == "__main__":
    B, D, H, O = 2, 8, 32, 4
    MAX_ITER = 5   # > 1  -> b_flag is zeros, as in the PyTorch module
    T = 4          # ponder steps for the fused multi-step driver

    key = jax.random.PRNGKey(0)
    k_x, k_h, k_p = jax.random.split(key, 3)

    x = jax.random.normal(k_x, (B, D), jnp.float32)
    previous_hidden = jax.random.normal(k_h, (B, H), jnp.float32)
    previous_ponder_cost = jnp.zeros((B, 1), jnp.float32)
    previous_steps = jnp.zeros((B, 1), jnp.float32)
    previous_state = (None, previous_hidden, previous_ponder_cost, previous_steps)

    params = make_params(k_p, D, H, O)
    prep = prepare_params(params, max_iter=MAX_ITER)   # one-time fold + pad

    # --- plain-JAX reference (unfolded / unpadded math, mirrors PyTorch) -----
    flag_val = 1.0 if MAX_ITER == 1 else 0.0
    x_n = jnp.concatenate((x, jnp.full((B, 1), flag_val, jnp.float32)), axis=1)

    def ref_step(h_prev):
        h = jnp.tanh(x_n @ params["w_ih"] + params["b_ih"]
                     + h_prev @ params["w_hh"] + params["b_hh"])
        return h @ params["w_out"] + params["b_out"], h

    # --- single SRNCell.forward step (module semantics) ----------------------
    y, s, ponder_cost, steps = srn_cell_forward(x, previous_state, prep)
    jax.block_until_ready((y, s, ponder_cost, steps))

    y_ref, h_ref = ref_step(previous_hidden)
    assert y.shape == (B, O) and s.shape == (B, H)
    assert jnp.allclose(y, y_ref, atol=1e-5), "output mismatch"
    assert jnp.allclose(s, h_ref, atol=1e-5), "hidden mismatch"
    assert jnp.allclose(steps, previous_steps + 1), "steps mismatch"
    assert jnp.allclose(ponder_cost, previous_ponder_cost), "ponder mismatch"

    # --- T ponder steps fused in one pallas_call ------------------------------
    ys, (y_T, s_T, pc_T, steps_T) = srn_ponder_forward(x, previous_state, prep, T)
    jax.block_until_ready((ys, y_T, s_T))
    h_r = previous_hidden
    ys_ref = []
    for _ in range(T):
        y_r, h_r = ref_step(h_r)
        ys_ref.append(y_r)
    ys_ref = jnp.stack(ys_ref)
    assert ys.shape == (T, B, O)
    assert jnp.allclose(ys, ys_ref, atol=1e-4), "multi-step output mismatch"
    assert jnp.allclose(s_T, h_r, atol=1e-4), "multi-step hidden mismatch"
    assert jnp.allclose(steps_T, previous_steps + T), "multi-step steps mismatch"
    assert jnp.allclose(pc_T, previous_ponder_cost), "multi-step ponder mismatch"

    # --- bf16-weight path (recommended format on v5e/v6e/v7x) ----------------
    prep_bf16 = prepare_params(params, max_iter=MAX_ITER,
                               weight_dtype=jnp.bfloat16)
    y_b, s_b, _, _ = srn_cell_forward(x, previous_state, prep_bf16)
    jax.block_until_ready((y_b, s_b))
    assert jnp.allclose(y_b, y_ref, atol=7.5e-2), "bf16 output mismatch"
    assert jnp.allclose(s_b, h_ref, atol=7.5e-2), "bf16 hidden mismatch"

    print("KERNEL_OK")
</pallas_src>

<mosaic_0001>
module attributes {stable_mosaic.version = 11 : i64} {
  func.func @_srn_steps_kernel(%arg0: i32, %arg1: i32, %arg2: memref<8x8xf32, #tpu.memory_space<vmem>>, %arg3: memref<8x128xf32, #tpu.memory_space<vmem>>, %arg4: memref<8x128xf32, #tpu.memory_space<vmem>>, %arg5: memref<128x128xf32, #tpu.memory_space<vmem>>, %arg6: memref<1x128xf32, #tpu.memory_space<vmem>>, %arg7: memref<128x128xf32, #tpu.memory_space<vmem>>, %arg8: memref<1x128xf32, #tpu.memory_space<vmem>>, %arg9: memref<1x8x128xf32, #tpu.memory_space<vmem>>, %arg10: memref<8x128xf32, #tpu.memory_space<vmem>>, %arg11: memref<8x128xf32, #tpu.memory_space<vmem>>, %arg12: memref<8x128xf32, #tpu.memory_space<vmem>>) attributes {dimension_semantics = [#tpu.dimension_semantics<parallel>, #tpu.dimension_semantics<arbitrary>], iteration_bounds = array<i64: 1, 1>, scalar_prefetch = 0 : i64, scratch_operands = 2 : i64, tpu.core_type = #tpu.core_type<tc>, window_params = [{transform_indices = @transform_0, window_bounds = array<i64: 8, 8>}, {transform_indices = @transform_1, window_bounds = array<i64: 8, 128>}, {pipeline_mode = #tpu.pipeline_mode<synchronous>, transform_indices = @transform_2, window_bounds = array<i64: 8, 128>}, {pipeline_mode = #tpu.pipeline_mode<synchronous>, transform_indices = @transform_3, window_bounds = array<i64: 128, 128>}, {pipeline_mode = #tpu.pipeline_mode<synchronous>, transform_indices = @transform_4, window_bounds = array<i64: 1, 128>}, {pipeline_mode = #tpu.pipeline_mode<synchronous>, transform_indices = @transform_5, window_bounds = array<i64: 128, 128>}, {pipeline_mode = #tpu.pipeline_mode<synchronous>, transform_indices = @transform_6, window_bounds = array<i64: 1, 128>}, {transform_indices = @transform_7, window_bounds = array<i64: 1, 8, 128>}, {transform_indices = @transform_8, window_bounds = array<i64: 8, 128>}]} {
    %c0_i32 = arith.constant 0 : i32
    %0 = arith.cmpi eq, %arg1, %c0_i32 : i32
    %1 = arith.extui %0 : i1 to i32
    %c0_i32_0 = arith.constant 0 : i32
    %2 = arith.cmpi ne, %1, %c0_i32_0 : i32
    scf.if %2 {
      %c0_18 = arith.constant 0 : index
      %c0_19 = arith.constant 0 : index
      %21 = vector.load %arg2[%c0_18, %c0_19] : memref<8x8xf32, #tpu.memory_space<vmem>>, vector<8x8xf32>
      %c0_20 = arith.constant 0 : index
      %c0_21 = arith.constant 0 : index
      %22 = vector.load %arg4[%c0_20, %c0_21] : memref<8x128xf32, #tpu.memory_space<vmem>>, vector<8x128xf32>
      %cst_22 = arith.constant dense<0.000000e+00> : vector<8x128xf32>
      %23 = tpu.matmul %21, %22, %cst_22 {dimension_numbers = #tpu.dot_dimension_numbers<[1], [0], [0], [1], [0, 0, 1, 1], [], []>} : vector<8x8xf32>, vector<8x128xf32>, vector<8x128xf32> -> vector<8x128xf32>
      %c0_23 = arith.constant 0 : index
      %c0_24 = arith.constant 0 : index
      %24 = vector.load %arg6[%c0_23, %c0_24] : memref<1x128xf32, #tpu.memory_space<vmem>>, vector<1x128xf32>
      %25 = vector.broadcast %24 : vector<1x128xf32> to vector<8x128xf32>
      %26 = arith.addf %23, %25 : vector<8x128xf32>
      %c0_25 = arith.constant 0 : index
      %c0_26 = arith.constant 0 : index
      %27 = vector.load %arg11[%c0_25, %c0_26] : memref<8x128xf32, #tpu.memory_space<vmem>>, vector<8x128xf32>
      tpu.vector_store %arg11[%c0_25, %c0_26], %26 {strides = array<i32>} : memref<8x128xf32, #tpu.memory_space<vmem>>, vector<8x128xf32>,
      %c0_27 = arith.constant 0 : index
      %c0_28 = arith.constant 0 : index
      %28 = vector.load %arg3[%c0_27, %c0_28] : memref<8x128xf32, #tpu.memory_space<vmem>>, vector<8x128xf32>
      %c0_29 = arith.constant 0 : index
      %c0_30 = arith.constant 0 : index
      %29 = vector.load %arg12[%c0_29, %c0_30] : memref<8x128xf32, #tpu.memory_space<vmem>>, vector<8x128xf32>
      tpu.vector_store %arg12[%c0_29, %c0_30], %28 {strides = array<i32>} : memref<8x128xf32, #tpu.memory_space<vmem>>, vector<8x128xf32>,
    } else {
    }
    %c0 = arith.constant 0 : index
    %c0_1 = arith.constant 0 : index
    %3 = vector.load %arg11[%c0, %c0_1] : memref<8x128xf32, #tpu.memory_space<vmem>>, vector<8x128xf32>
    %c0_2 = arith.constant 0 : index
    %c0_3 = arith.constant 0 : index
    %4 = vector.load %arg12[%c0_2, %c0_3] : memref<8x128xf32, #tpu.memory_space<vmem>>, vector<8x128xf32>
    %c0_4 = arith.constant 0 : index
    %c0_5 = arith.constant 0 : index
    %5 = vector.load %arg5[%c0_4, %c0_5] : memref<128x128xf32, #tpu.memory_space<vmem>>, vector<128x128xf32>
    %cst = arith.constant dense<0.000000e+00> : vector<8x128xf32>
    %6 = tpu.matmul %4, %5, %cst {dimension_numbers = #tpu.dot_dimension_numbers<[1], [0], [0], [1], [0, 0, 1, 1], [], []>} : vector<8x128xf32>, vector<128x128xf32>, vector<8x128xf32> -> vector<8x128xf32>
    %7 = arith.addf %3, %6 : vector<8x128xf32>
    %8 = math.tanh %7 : vector<8x128xf32>
    %c0_6 = arith.constant 0 : index
    %c0_7 = arith.constant 0 : index
    %9 = vector.load %arg12[%c0_6, %c0_7] : memref<8x128xf32, #tpu.memory_space<vmem>>, vector<8x128xf32>
    tpu.vector_store %arg12[%c0_6, %c0_7], %8 {strides = array<i32>} : memref<8x128xf32, #tpu.memory_space<vmem>>, vector<8x128xf32>,
    %c0_8 = arith.constant 0 : index
    %c0_9 = arith.constant 0 : index
    %10 = vector.load %arg7[%c0_8, %c0_9] : memref<128x128xf32, #tpu.memory_space<vmem>>, vector<128x128xf32>
    %cst_10 = arith.constant dense<0.000000e+00> : vector<8x128xf32>
    %11 = tpu.matmul %8, %10, %cst_10 {dimension_numbers = #tpu.dot_dimension_numbers<[1], [0], [0], [1], [0, 0, 1, 1], [], []>} : vector<8x128xf32>, vector<128x128xf32>, vector<8x128xf32> -> vector<8x128xf32>
    %c0_11 = arith.constant 0 : index
    %c0_12 = arith.constant 0 : index
    %12 = vector.load %arg8[%c0_11, %c0_12] : memref<1x128xf32, #tpu.memory_space<vmem>>, vector<1x128xf32>
    %13 = vector.broadcast %12 : vector<1x128xf32> to vector<8x128xf32>
    %14 = arith.addf %11, %13 : vector<8x128xf32>
    %c0_13 = arith.constant 0 : index
    %c0_14 = arith.constant 0 : index
    %c0_15 = arith.constant 0 : index
    %15 = vector.load %arg9[%c0_13, %c0_14, %c0_15] : memref<1x8x128xf32, #tpu.memory_space<vmem>>, vector<1x8x128xf32>
    %16 = vector.shape_cast %15 : vector<1x8x128xf32> to vector<8x128xf32>
    %17 = vector.shape_cast %14 : vector<8x128xf32> to vector<1x8x128xf32>
    tpu.vector_store %arg9[%c0_13, %c0_14, %c0_15], %17 {strides = array<i32>} : memref<1x8x128xf32, #tpu.memory_space<vmem>>, vector<1x8x128xf32>,
    %c0_i32_16 = arith.constant 0 : i32
    %18 = arith.cmpi eq, %arg1, %c0_i32_16 : i32
    %19 = arith.extui %18 : i1 to i32
    %c0_i32_17 = arith.constant 0 : i32
    %20 = arith.cmpi ne, %19, %c0_i32_17 : i32
    scf.if %20 {
      %c0_18 = arith.constant 0 : index
      %c0_19 = arith.constant 0 : index
      %21 = vector.load %arg10[%c0_18, %c0_19] : memref<8x128xf32, #tpu.memory_space<vmem>>, vector<8x128xf32>
      tpu.vector_store %arg10[%c0_18, %c0_19], %8 {strides = array<i32>} : memref<8x128xf32, #tpu.memory_space<vmem>>, vector<8x128xf32>,
    } else {
    }
    return
  }
  func.func @transform_0(%arg0: i32, %arg1: i32) -> (i32, i32) {
    %c0_i32 = arith.constant 0 : i32
    %c0_i32_0 = arith.constant 0 : i32
    return %arg0, %c0_i32 : i32, i32
  }
  func.func @transform_1(%arg0: i32, %arg1: i32) -> (i32, i32) {
    %c0_i32 = arith.constant 0 : i32
    %c0_i32_0 = arith.constant 0 : i32
    return %arg0, %c0_i32 : i32, i32
  }
  func.func @transform_2(%arg0: i32, %arg1: i32) -> (i32, i32) {
    %c0_i32 = arith.constant 0 : i32
    %c0_i32_0 = arith.constant 0 : i32
    %c0_i32_1 = arith.constant 0 : i32
    return %c0_i32, %c0_i32_0 : i32, i32
  }
  func.func @transform_3(%arg0: i32, %arg1: i32) -> (i32, i32) {
    %c0_i32 = arith.constant 0 : i32
    %c0_i32_0 = arith.constant 0 : i32
    %c0_i32_1 = arith.constant 0 : i32
    return %c0_i32, %c0_i32_0 : i32, i32
  }
  func.func @transform_4(%arg0: i32, %arg1: i32) -> (i32, i32) {
    %c0_i32 = arith.constant 0 : i32
    %c0_i32_0 = arith.constant 0 : i32
    %c0_i32_1 = arith.constant 0 : i32
    return %c0_i32, %c0_i32_0 : i32, i32
  }
  func.func @transform_5(%arg0: i32, %arg1: i32) -> (i32, i32) {
    %c0_i32 = arith.constant 0 : i32
    %c0_i32_0 = arith.constant 0 : i32
    %c0_i32_1 = arith.constant 0 : i32
    return %c0_i32, %c0_i32_0 : i32, i32
  }
  func.func @transform_6(%arg0: i32, %arg1: i32) -> (i32, i32) {
    %c0_i32 = arith.constant 0 : i32
    %c0_i32_0 = arith.constant 0 : i32
    %c0_i32_1 = arith.constant 0 : i32
    return %c0_i32, %c0_i32_0 : i32, i32
  }
  func.func @transform_7(%arg0: i32, %arg1: i32) -> (i32, i32, i32) {
    %c0_i32 = arith.constant 0 : i32
    %c0_i32_0 = arith.constant 0 : i32
    return %arg1, %arg0, %c0_i32 : i32, i32, i32
  }
  func.func @transform_8(%arg0: i32, %arg1: i32) -> (i32, i32) {
    %c0_i32 = arith.constant 0 : i32
    %c0_i32_0 = arith.constant 0 : i32
    return %arg0, %c0_i32 : i32, i32
  }
}

</mosaic_0001>

<llo_original>
// kernel: tpu_custom_call.1
$region0: #{tpu_custom_call.1}
  #allocation0 [shape = 'u32[]', space=smem, size = 0x4, offset = 0x4, fixed_abs, tag = 'smem constant byte address 0x4 - core index']
  #allocation1 [shape = 'u32[144,128]{1,0:T(1,128)}', space=vmem, size = 0x12000, scoped, tag = 'internal scratch']
  #allocation2 [shape = 'f32[8,128]{1,0:T(8,128)}', space=vmem, size = 0x1000, scoped, tag = 'scratch operand']
  #allocation3 [shape = 'f32[8,128]{1,0:T(8,128)}', space=vmem, size = 0x1000, scoped, tag = 'scratch operand']
  %s0 = inlined_call_operand.hbm [shape: f32[8,8], index: 0, kind: input, shape index: {}]
  %s1 = inlined_call_operand.hbm [shape: f32[8,128], index: 1, kind: input, shape index: {}]
  %s2 = inlined_call_operand.hbm [shape: f32[8,128], index: 2, kind: input, shape index: {}]
  %s3 = inlined_call_operand.hbm [shape: f32[128,128], index: 3, kind: input, shape index: {}]
  %s4 = inlined_call_operand.vmem [shape: f32[1,128], index: 4, kind: input, shape index: {}]
  %s5 = inlined_call_operand.hbm [shape: f32[128,128], index: 5, kind: input, shape index: {}]
  %s6 = inlined_call_operand.vmem [shape: f32[1,128], index: 6, kind: input, shape index: {}]
  %s7 = inlined_call_operand.hbm [shape: f32[1,8,128], index: 7, kind: output, shape index: {0}]
  %s8 = inlined_call_operand.hbm [shape: f32[8,128], index: 8, kind: output, shape index: {1}]
  %9 = xla_tuple %s7, %s8
  %s10 = sld [smem:[#allocation0]]
  $region74: #{tpu_custom_call.1} parent=0
    _
  %s12 = ssub.s32 1, %s10
  %s13 = scalar_select 0, %s12, %s10
  $region1: #{tpu_custom_call.1} parent=0
    #allocation4 [shape = 'u8[4096]{0}', space=vmem, size = 0x1000, scoped, tag = 'input window, operand 0, single buffered']
    #allocation5 [shape = 's32[1]{0}', space=sflag, size = 0x4, scoped, tag = 'scoped memory for tpu_custom_call.1']
    #allocation6 [shape = 's32[1]{0}', space=sflag, size = 0x4, scoped, tag = 'scoped memory for tpu_custom_call.1']
    #allocation7 [shape = 'u8[4096]{0}', space=vmem, size = 0x1000, scoped, tag = 'input window, operand 1, single buffered']
    #allocation8 [shape = 's32[1]{0}', space=sflag, size = 0x4, scoped, tag = 'scoped memory for tpu_custom_call.1']
    #allocation9 [shape = 'u8[4096]{0}', space=vmem, size = 0x1000, scoped, tag = 'input window, operand 2, single buffered']
    #allocation10 [shape = 'u8[65536]{0}', space=vmem, size = 0x10000, scoped, tag = 'input window, operand 3, single buffered']
    #allocation11 [shape = 's32[1]{0}', space=sflag, size = 0x4, scoped, tag = 'scoped memory for tpu_custom_call.1']
    #allocation12 [shape = 'u8[65536]{0}', space=vmem, size = 0x10000, scoped, tag = 'input window, operand 5, single buffered']
    #allocation13 [shape = 'u8[4096]{0}', space=vmem, size = 0x1000, scoped, tag = 'output window, operand 0, single buffered']
    #allocation14 [shape = 'u8[4096]{0}', space=vmem, size = 0x1000, scoped, tag = 'output window, operand 1, single buffered']
    #allocation15 [shape = 's32[1]{0}', space=sflag, size = 0x4, scoped, tag = 'scoped memory for tpu_custom_call.1']
    %14 = vsyncpa [#allocation5], 0
    %15 = vsyncpa [#allocation8], 0
    %16 = vsyncpa [#allocation11], 0
    %17 = vsyncpa [#allocation6], 0
    %18 = vsyncpa [#allocation15], 0
    // Predicated region
    $region2: #{tpu_custom_call.1} parent=1 // pred_check
      _
    $region3: #{tpu_custom_call.1} parent=1 // pred_check_branch
      %20 = sbr.rel (0) target = $region5
    $region4: #{tpu_custom_call.1} parent=1 // pred_region
      %s22 = ssub.s32 128, 128
      %23 = vsyncadd [#allocation5], %s22
      %s25 = sshll.u32 [#allocation4], 4
      %s26 = int_to_ptr.vmem [resolvable:$true] %s25
      %28 = dma.hbm_to_vmem [thread:$0]  %s0, 128, %s26, [#allocation5]
    $region5: #{tpu_custom_call.1} parent=1 // pred_fallthru
      _
    // Predicated region
    $region6: #{tpu_custom_call.1} parent=1 // pred_check
      _
    $region7: #{tpu_custom_call.1} parent=1 // pred_check_branch
      %30 = sbr.rel (0) target = $region9
    $region8: #{tpu_custom_call.1} parent=1 // pred_region
      %s32 = ssub.s32 128, 128
      %33 = vsyncadd [#allocation8], %s32
      %s35 = sshll.u32 [#allocation7], 4
      %s36 = int_to_ptr.vmem [resolvable:$true] %s35
      %38 = dma.hbm_to_vmem [thread:$0]  %s1, 128, %s36, [#allocation8]
    $region9: #{tpu_custom_call.1} parent=1 // pred_fallthru
      _
    // Predicated region
    $region10: #{tpu_custom_call.1} parent=1 // pred_check
      _
    $region11: #{tpu_custom_call.1} parent=1 // pred_check_branch
      %40 = sbr.rel (0) target = $region13
    $region12: #{tpu_custom_call.1} parent=1 // pred_region
      %s42 = ssub.s32 128, 128
      %43 = vsyncadd [#allocation8], %s42
      %s45 = sshll.u32 [#allocation9], 4
      %s46 = int_to_ptr.vmem [resolvable:$true] %s45
      %48 = dma.hbm_to_vmem [thread:$0]  %s2, 128, %s46, [#allocation8]
    $region13: #{tpu_custom_call.1} parent=1 // pred_fallthru
      _
    // Predicated region
    $region14: #{tpu_custom_call.1} parent=1 // pred_check
      _
    $region15: #{tpu_custom_call.1} parent=1 // pred_check_branch
      %50 = sbr.rel (0) target = $region17
    $region16: #{tpu_custom_call.1} parent=1 // pred_region
      %s52 = ssub.s32 2048, 2048
      %53 = vsyncadd [#allocation11], %s52
      %s54 = sshll.u32 [#allocation10], 4
      %s55 = int_to_ptr.vmem [resolvable:$true] %s54
      %60 = dma.hbm_to_vmem [thread:$0]  %s3, 2048, %s55, [#allocation11], 128, 128, 8
    $region17: #{tpu_custom_call.1} parent=1 // pred_fallthru
      _
    // Predicated region
    $region18: #{tpu_custom_call.1} parent=1 // pred_check
      _
    $region19: #{tpu_custom_call.1} parent=1 // pred_check_branch
      %62 = sbr.rel (0) target = $region21
    $region20: #{tpu_custom_call.1} parent=1 // pred_region
      _
    $region21: #{tpu_custom_call.1} parent=1 // pred_fallthru
      _
    // Predicated region
    $region22: #{tpu_custom_call.1} parent=1 // pred_check
      _
    $region23: #{tpu_custom_call.1} parent=1 // pred_check_branch
      %64 = sbr.rel (0) target = $region25
    $region24: #{tpu_custom_call.1} parent=1 // pred_region
      %s66 = ssub.s32 2048, 2048
      %67 = vsyncadd [#allocation11], %s66
      %s68 = sshll.u32 [#allocation12], 4
      %s69 = int_to_ptr.vmem [resolvable:$true] %s68
      %74 = dma.hbm_to_vmem [thread:$0]  %s5, 2048, %s69, [#allocation11], 128, 128, 8
    $region25: #{tpu_custom_call.1} parent=1 // pred_fallthru
      _
    // Predicated region
    $region26: #{tpu_custom_call.1} parent=1 // pred_check
      _
    $region27: #{tpu_custom_call.1} parent=1 // pred_check_branch
      %76 = sbr.rel (0) target = $region29
    $region28: #{tpu_custom_call.1} parent=1 // pred_region
      _
    $region29: #{tpu_custom_call.1} parent=1 // pred_fallthru
      _
    // Predicated region
    $region30: #{tpu_custom_call.1} parent=1 // pred_check
      _
    $region31: #{tpu_custom_call.1} parent=1 // pred_check_branch
      %78 = sbr.rel (0) target = $region33
    $region32: #{tpu_custom_call.1} parent=1 // pred_region
      %79 = dma.done [#allocation5], 128
    $region33: #{tpu_custom_call.1} parent=1 // pred_fallthru
      _
    // Predicated region
    $region34: #{tpu_custom_call.1} parent=1 // pred_check
      _
    $region35: #{tpu_custom_call.1} parent=1 // pred_check_branch
      %81 = sbr.rel (0) target = $region37
    $region36: #{tpu_custom_call.1} parent=1 // pred_region
      %82 = dma.done [#allocation8], 128
    $region37: #{tpu_custom_call.1} parent=1 // pred_fallthru
      _
    // Predicated region
    $region38: #{tpu_custom_call.1} parent=1 // pred_check
      _
    $region39: #{tpu_custom_call.1} parent=1 // pred_check_branch
      %84 = sbr.rel (0) target = $region41
    $region40: #{tpu_custom_call.1} parent=1 // pred_region
      %85 = dma.done [#allocation8], 128
    $region41: #{tpu_custom_call.1} parent=1 // pred_fallthru
      _
    // Predicated region
    $region42: #{tpu_custom_call.1} parent=1 // pred_check
      _
    $region43: #{tpu_custom_call.1} parent=1 // pred_check_branch
      %87 = sbr.rel (0) target = $region45
    $region44: #{tpu_custom_call.1} parent=1 // pred_region
      %88 = dma.done [#allocation11], 2048
    $region45: #{tpu_custom_call.1} parent=1 // pred_fallthru
      _
    // Predicated region
    $region46: #{tpu_custom_call.1} parent=1 // pred_check
      _
    $region47: #{tpu_custom_call.1} parent=1 // pred_check_branch
      %90 = sbr.rel (0) target = $region49
    $region48: #{tpu_custom_call.1} parent=1 // pred_region
      %91 = dma.done [#allocation11], 2048
    $region49: #{tpu_custom_call.1} parent=1 // pred_fallthru
      _
    %p92 = scmp.eq.s32.totalorder 0, 0
    // Predicated region
    $region50: #{tpu_custom_call.1} parent=1 // pred_check
      %p93 = pneg %p92
    $region51: #{tpu_custom_call.1} parent=1 // pred_check_branch
      %95 = sbr.rel (%p93) target = $region53
    $region52: #{tpu_custom_call.1} parent=1 // pred_region
      %v96 = vld [vmem:[#allocation4] sm:$0xff]
      %v97 = vld [vmem:[#allocation9] sm:$0xff]
      %v98 = vld [vmem:[%s4] sm:$0x1]
      %v100 = vlaneseq
      %v101 = vshrl.u32 %v100, 7
      %v102 = vsub.s32 0, %v101
      %v103 = vrot.slane %v98, %v102
      %vm105 = vcmask 64512
      %v107 = vsel %vm105, %v96, 0
      %109 = vmatprep.subr.mxu0 0.0
      %110 = vmatpush1.msra.mxu0 %v97
      %111 = vmatprep.subr.mxu0 0.0
      %112 = vmatpush1.msra.mxu0 0.0
      %113 = vmatprep.subr.mxu0 0.0
      %114 = vmatpush1.msra.mxu0 0.0
      %115 = vmatprep.subr.mxu0 0.0
      %116 = vmatpush1.msra.mxu0 0.0
      %117 = vmatprep.subr.mxu0 0.0
      %118 = vmatpush1.msra.mxu0 0.0
      %119 = vmatprep.subr.mxu0 0.0
      %120 = vmatpush1.msra.mxu0 0.0
      %121 = vmatprep.subr.mxu0 0.0
      %122 = vmatpush1.msra.mxu0 0.0
      %123 = vmatprep.subr.mxu0 0.0
      %124 = vmatpush1.msra.mxu0 0.0
      %125 = vmatprep.subr.mxu0 0.0
      %126 = vmatpush1.msra.mxu0 0.0
      %127 = vmatprep.subr.mxu0 0.0
      %128 = vmatpush1.msra.mxu0 0.0
      %129 = vmatprep.subr.mxu0 0.0
      %130 = vmatpush1.msra.mxu0 0.0
      %131 = vmatprep.subr.mxu0 0.0
      %132 = vmatpush1.msra.mxu0 0.0
      %133 = vmatprep.subr.mxu0 0.0
      %134 = vmatpush1.msra.mxu0 0.0
      %135 = vmatprep.subr.mxu0 0.0
      %136 = vmatpush1.msra.mxu0 0.0
      %137 = vmatprep.subr.mxu0 0.0
      %138 = vmatpush1.msra.mxu0 0.0
      %139 = vmatprep.subr.mxu0 0.0
      %140 = vmatpush1.msra.mxu0 0.0
      %141 = vmatprep.subr.mxu0 0.0
      %142 = vmatpush1.msra.mxu0 0.0
      %143 = vmatprep.subr.mxu0 0.0
      %144 = vmatpush1.msra.mxu0 0.0
      %145 = vmatprep.subr.mxu0 0.0
      %146 = vmatpush1.msra.mxu0 0.0
      %147 = vmatprep.subr.mxu0 0.0
      %148 = vmatpush1.msra.mxu0 0.0
      %149 = vmatprep.subr.mxu0 0.0
      %150 = vmatpush1.msra.mxu0 0.0
      %151 = vmatprep.subr.mxu0 0.0
      %152 = vmatpush1.msra.mxu0 0.0
      %153 = vmatprep.subr.mxu0 0.0
      %154 = vmatpush1.msra.mxu0 0.0
      %155 = vmatprep.subr.mxu0 0.0
      %156 = vmatpush1.msra.mxu0 0.0
      %157 = vmatprep.subr.mxu0 0.0
      %158 = vmatpush1.msra.mxu0 0.0
      %159 = vmatprep.subr.mxu0 0.0
      %160 = vmatpush1.msra.mxu0 0.0
      %161 = vmatprep.subr.mxu0 0.0
      %162 = vmatpush1.msra.mxu0 0.0
      %163 = vmatprep.subr.mxu0 0.0
      %164 = vmatpush1.msra.mxu0 0.0
      %165 = vmatprep.subr.mxu0 0.0
      %166 = vmatpush1.msra.mxu0 0.0
      %167 = vmatprep.subr.mxu0 0.0
      %168 = vmatpush1.msra.mxu0 0.0
      %169 = vmatprep.subr.mxu0 0.0
      %170 = vmatpush1.msra.mxu0 0.0
      %171 = vmatprep.subr.mxu0 0.0
      %172 = vmatpush1.msra.mxu0 0.0
      %173 = vmatprep.mubr.f32.mxu0 0.0
      %174 = vmatmul.mubr.f32.gmra.mrb[0].mxu0 %v107
      %v175 = vpop.f32.mrb[0].mxu0
      %v176 = vadd.f32 %v103, %v175
      %v177 = vpop.f32.mrb[0].mxu0
      %178 = vdwg.mxu0
      %179 = vst [vmem:[#allocation2] sm:$0xff] %v176
      %v180 = vld [vmem:[#allocation7] sm:$0xff]
      %181 = vst [vmem:[#allocation3] sm:$0xff] %v180
    $region53: #{tpu_custom_call.1} parent=1 // pred_fallthru
      _
    %v182 = vld [vmem:[#allocation2] sm:$0xff]
    %v183 = vld [vmem:[#allocation3] sm:$0xff]
    %v184 = vld [vmem:[#allocation10] sm:$0xff]
    %v185 = vld [vmem:[#allocation10 + $0x8] sm:$0xff]
    %v186 = vld [vmem:[#allocation10 + $0x10] sm:$0xff]
    %v187 = vld [vmem:[#allocation10 + $0x18] sm:$0xff]
    %v188 = vld [vmem:[#allocation10 + $0x20] sm:$0xff]
    %v189 = vld [vmem:[#allocation10 + $0x28] sm:$0xff]
    %v190 = vld [vmem:[#allocation10 + $0x30] sm:$0xff]
    %v191 = vld [vmem:[#allocation10 + $0x38] sm:$0xff]
    %v192 = vld [vmem:[#allocation10 + $0x40] sm:$0xff]
    %v193 = vld [vmem:[#allocation10 + $0x48] sm:$0xff]
    %v194 = vld [vmem:[#allocation10 + $0x50] sm:$0xff]
    %v195 = vld [vmem:[#allocation10 + $0x58] sm:$0xff]
    %v196 = vld [vmem:[#allocation10 + $0x60] sm:$0xff]
    %v197 = vld [vmem:[#allocation10 + $0x68] sm:$0xff]
    %v198 = vld [vmem:[#allocation10 + $0x70] sm:$0xff]
    %v199 = vld [vmem:[#allocation10 + $0x78] sm:$0xff]
    %200 = vmatprep.subr.mxu0 0.0
    %201 = vmatpush1.msra.mxu0 %v184
    %202 = vmatprep.subr.mxu0 0.0
    %203 = vmatpush1.msra.mxu0 %v185
    %204 = vmatprep.subr.mxu0 0.0
    %205 = vmatpush1.msra.mxu0 %v186
    %206 = vmatprep.subr.mxu0 0.0
    %207 = vmatpush1.msra.mxu0 %v187
    %208 = vmatprep.subr.mxu0 0.0
    %209 = vmatpush1.msra.mxu0 %v188
    %210 = vmatprep.subr.mxu0 0.0
    %211 = vmatpush1.msra.mxu0 %v189
    %212 = vmatprep.subr.mxu0 0.0
    %213 = vmatpush1.msra.mxu0 %v190
    %214 = vmatprep.subr.mxu0 0.0
    %215 = vmatpush1.msra.mxu0 %v191
    %216 = vmatprep.subr.mxu0 0.0
    %217 = vmatpush1.msra.mxu0 %v192
    %218 = vmatprep.subr.mxu0 0.0
    %219 = vmatpush1.msra.mxu0 %v193
    %220 = vmatprep.subr.mxu0 0.0
    %221 = vmatpush1.msra.mxu0 %v194
    %222 = vmatprep.subr.mxu0 0.0
    %223 = vmatpush1.msra.mxu0 %v195
    %224 = vmatprep.subr.mxu0 0.0
    %225 = vmatpush1.msra.mxu0 %v196
    %226 = vmatprep.subr.mxu0 0.0
    %227 = vmatpush1.msra.mxu0 %v197
    %228 = vmatprep.subr.mxu0 0.0
    %229 = vmatpush1.msra.mxu0 %v198
    %230 = vmatprep.subr.mxu0 0.0
    %231 = vmatpush1.msra.mxu0 %v199
    %232 = vmatprep.subr.mxu0 0.0
    %233 = vmatpush1.msra.mxu0 0.0
    %234 = vmatprep.subr.mxu0 0.0
    %235 = vmatpush1.msra.mxu0 0.0
    %236 = vmatprep.subr.mxu0 0.0
    %237 = vmatpush1.msra.mxu0 0.0
    %238 = vmatprep.subr.mxu0 0.0
    %239 = vmatpush1.msra.mxu0 0.0
    %240 = vmatprep.subr.mxu0 0.0
    %241 = vmatpush1.msra.mxu0 0.0
    %242 = vmatprep.subr.mxu0 0.0
    %243 = vmatpush1.msra.mxu0 0.0
    %244 = vmatprep.subr.mxu0 0.0
    %245 = vmatpush1.msra.mxu0 0.0
    %246 = vmatprep.subr.mxu0 0.0
    %247 = vmatpush1.msra.mxu0 0.0
    %248 = vmatprep.subr.mxu0 0.0
    %249 = vmatpush1.msra.mxu0 0.0
    %250 = vmatprep.subr.mxu0 0.0
    %251 = vmatpush1.msra.mxu0 0.0
    %252 = vmatprep.subr.mxu0 0.0
    %253 = vmatpush1.msra.mxu0 0.0
    %254 = vmatprep.subr.mxu0 0.0
    %255 = vmatpush1.msra.mxu0 0.0
    %256 = vmatprep.subr.mxu0 0.0
    %257 = vmatpush1.msra.mxu0 0.0
    %258 = vmatprep.subr.mxu0 0.0
    %259 = vmatpush1.msra.mxu0 0.0
    %260 = vmatprep.subr.mxu0 0.0
    %261 = vmatpush1.msra.mxu0 0.0
    %262 = vmatprep.subr.mxu0 0.0
    %263 = vmatpush1.msra.mxu0 0.0
    %264 = vmatprep.mubr.f32.mxu0 0.0
    %265 = vmatmul.mubr.f32.gmra.mrb[0].mxu0 %v183
    %v266 = vpop.f32.mrb[0].mxu0
    %v267 = vadd.f32 0.0, %v266
    %v268 = vpop.f32.mrb[0].mxu0
    %269 = vdwg.mxu0
    %v270 = vadd.f32 %v182, %v267
    %v271 = vtanh.pop %v270
    %272 = vst [vmem:[#allocation3] sm:$0xff] %v271
    %v273 = vld [vmem:[#allocation12] sm:$0xff]
    %v274 = vld [vmem:[#allocation12 + $0x8] sm:$0xff]
    %v275 = vld [vmem:[#allocation12 + $0x10] sm:$0xff]
    %v276 = vld [vmem:[#allocation12 + $0x18] sm:$0xff]
    %v277 = vld [vmem:[#allocation12 + $0x20] sm:$0xff]
    %v278 = vld [vmem:[#allocation12 + $0x28] sm:$0xff]
    %v279 = vld [vmem:[#allocation12 + $0x30] sm:$0xff]
    %v280 = vld [vmem:[#allocation12 + $0x38] sm:$0xff]
    %v281 = vld [vmem:[#allocation12 + $0x40] sm:$0xff]
    %v282 = vld [vmem:[#allocation12 + $0x48] sm:$0xff]
    %v283 = vld [vmem:[#allocation12 + $0x50] sm:$0xff]
    %v284 = vld [vmem:[#allocation12 + $0x58] sm:$0xff]
    %v285 = vld [vmem:[#allocation12 + $0x60] sm:$0xff]
    %v286 = vld [vmem:[#allocation12 + $0x68] sm:$0xff]
    %v287 = vld [vmem:[#allocation12 + $0x70] sm:$0xff]
    %v288 = vld [vmem:[#allocation12 + $0x78] sm:$0xff]
    %v289 = vld [vmem:[%s6] sm:$0x1]
    %v291 = vlaneseq
    %v292 = vshrl.u32 %v291, 7
    %v293 = vsub.s32 0, %v292
    %v294 = vrot.slane %v289, %v293
    %296 = vmatprep.subr.mxu0 0.0
    %297 = vmatpush1.msra.mxu0 %v273
    %298 = vmatprep.subr.mxu0 0.0
    %299 = vmatpush1.msra.mxu0 %v274
    %300 = vmatprep.subr.mxu0 0.0
    %301 = vmatpush1.msra.mxu0 %v275
    %302 = vmatprep.subr.mxu0 0.0
    %303 = vmatpush1.msra.mxu0 %v276
    %304 = vmatprep.subr.mxu0 0.0
    %305 = vmatpush1.msra.mxu0 %v277
    %306 = vmatprep.subr.mxu0 0.0
    %307 = vmatpush1.msra.mxu0 %v278
    %308 = vmatprep.subr.mxu0 0.0
    %309 = vmatpush1.msra.mxu0 %v279
    %310 = vmatprep.subr.mxu0 0.0
    %311 = vmatpush1.msra.mxu0 %v280
    %312 = vmatprep.subr.mxu0 0.0
    %313 = vmatpush1.msra.mxu0 %v281
    %314 = vmatprep.subr.mxu0 0.0
    %315 = vmatpush1.msra.mxu0 %v282
    %316 = vmatprep.subr.mxu0 0.0
    %317 = vmatpush1.msra.mxu0 %v283
    %318 = vmatprep.subr.mxu0 0.0
    %319 = vmatpush1.msra.mxu0 %v284
    %320 = vmatprep.subr.mxu0 0.0
    %321 = vmatpush1.msra.mxu0 %v285
    %322 = vmatprep.subr.mxu0 0.0
    %323 = vmatpush1.msra.mxu0 %v286
    %324 = vmatprep.subr.mxu0 0.0
    %325 = vmatpush1.msra.mxu0 %v287
    %326 = vmatprep.subr.mxu0 0.0
    %327 = vmatpush1.msra.mxu0 %v288
    %328 = vmatprep.subr.mxu0 0.0
    %329 = vmatpush1.msra.mxu0 0.0
    %330 = vmatprep.subr.mxu0 0.0
    %331 = vmatpush1.msra.mxu0 0.0
    %332 = vmatprep.subr.mxu0 0.0
    %333 = vmatpush1.msra.mxu0 0.0
    %334 = vmatprep.subr.mxu0 0.0
    %335 = vmatpush1.msra.mxu0 0.0
    %336 = vmatprep.subr.mxu0 0.0
    %337 = vmatpush1.msra.mxu0 0.0
    %338 = vmatprep.subr.mxu0 0.0
    %339 = vmatpush1.msra.mxu0 0.0
    %340 = vmatprep.subr.mxu0 0.0
    %341 = vmatpush1.msra.mxu0 0.0
    %342 = vmatprep.subr.mxu0 0.0
    %343 = vmatpush1.msra.mxu0 0.0
    %344 = vmatprep.subr.mxu0 0.0
    %345 = vmatpush1.msra.mxu0 0.0
    %346 = vmatprep.subr.mxu0 0.0
    %347 = vmatpush1.msra.mxu0 0.0
    %348 = vmatprep.subr.mxu0 0.0
    %349 = vmatpush1.msra.mxu0 0.0
    %350 = vmatprep.subr.mxu0 0.0
    %351 = vmatpush1.msra.mxu0 0.0
    %352 = vmatprep.subr.mxu0 0.0
    %353 = vmatpush1.msra.mxu0 0.0
    %354 = vmatprep.subr.mxu0 0.0
    %355 = vmatpush1.msra.mxu0 0.0
    %356 = vmatprep.subr.mxu0 0.0
    %357 = vmatpush1.msra.mxu0 0.0
    %358 = vmatprep.subr.mxu0 0.0
    %359 = vmatpush1.msra.mxu0 0.0
    %360 = vmatprep.mubr.f32.mxu0 0.0
    %361 = vmatmul.mubr.f32.gmra.mrb[0].mxu0 %v271
    %v362 = vpop.f32.mrb[0].mxu0
    %v363 = vadd.f32 %v294, %v362
    %v364 = vpop.f32.mrb[0].mxu0
    %365 = vdwg.mxu0
    %366 = vst [vmem:[#allocation13] sm:$0xff] %v363
    // Predicated region
    $region54: #{tpu_custom_call.1} parent=1 // pred_check
      %p367 = pneg %p92
    $region55: #{tpu_custom_call.1} parent=1 // pred_check_branch
      %369 = sbr.rel (%p367) target = $region57
    $region56: #{tpu_custom_call.1} parent=1 // pred_region
      %370 = vst [vmem:[#allocation14] sm:$0xff] %v271
    $region57: #{tpu_custom_call.1} parent=1 // pred_fallthru
      _
    // Predicated region
    $region58: #{tpu_custom_call.1} parent=1 // pred_check
      _
    $region59: #{tpu_custom_call.1} parent=1 // pred_check_branch
      %372 = sbr.rel (0) target = $region61
    $region60: #{tpu_custom_call.1} parent=1 // pred_region
      %s374 = ssub.s32 128, 128
      %375 = vsyncadd [#allocation6], %s374
      %s377 = sshll.u32 [#allocation13], 4
      %s378 = int_to_ptr.vmem [resolvable:$true] %s377
      %380 = dma.vmem_to_hbm [thread:$0]  %s378, 128, %s7, [#allocation6]
    $region61: #{tpu_custom_call.1} parent=1 // pred_fallthru
      _
    // Predicated region
    $region62: #{tpu_custom_call.1} parent=1 // pred_check
      _
    $region63: #{tpu_custom_call.1} parent=1 // pred_check_branch
      %382 = sbr.rel (0) target = $region65
    $region64: #{tpu_custom_call.1} parent=1 // pred_region
      %s384 = ssub.s32 128, 128
      %385 = vsyncadd [#allocation15], %s384
      %s387 = sshll.u32 [#allocation14], 4
      %s388 = int_to_ptr.vmem [resolvable:$true] %s387
      %390 = dma.vmem_to_hbm [thread:$0]  %s388, 128, %s8, [#allocation15]
    $region65: #{tpu_custom_call.1} parent=1 // pred_fallthru
      _
    // Predicated region
    $region66: #{tpu_custom_call.1} parent=1 // pred_check
      _
    $region67: #{tpu_custom_call.1} parent=1 // pred_check_branch
      %392 = sbr.rel (0) target = $region69
    $region68: #{tpu_custom_call.1} parent=1 // pred_region
      %393 = dma.done [#allocation6], 128
    $region69: #{tpu_custom_call.1} parent=1 // pred_fallthru
      _
    // Predicated region
    $region70: #{tpu_custom_call.1} parent=1 // pred_check
      _
    $region71: #{tpu_custom_call.1} parent=1 // pred_check_branch
      %395 = sbr.rel (0) target = $region73
    $region72: #{tpu_custom_call.1} parent=1 // pred_region
      %396 = dma.done [#allocation15], 128
    $region73: #{tpu_custom_call.1} parent=1 // pred_fallthru
      _
    %397 = vsyncpa [#allocation5], 1
    %398 = vsyncpa [#allocation8], 1
    %399 = vsyncpa [#allocation11], 1
    %400 = vsyncpa [#allocation6], 1
    %401 = vsyncpa [#allocation15], 1

</llo_original>
